<compile_context>
chip_gen: v7x
topology: tpu7x:2x2x1
jax: 0.10.0
libtpu: 0.0.40
codegen_flags: <defaults>
</compile_context>

<pallas_src>
import jax
import jax.numpy as jnp
from jax.experimental import pallas as pl
from jax.experimental.pallas import tpu as pltpu


def _pick_images_per_block(N, H, W, C, H_out, W_out,
                           budget_bytes=8 << 20, max_unroll=8):
    """Largest per-step image batch that (a) divides N, (b) keeps >=2 grid steps
    (so both v7x TensorCores get work), (c) keeps double-buffered blocks small."""
    per_img = 4 * (H * W + C * H_out * W_out)  # f32 input + output bytes per image
    best = 1
    for nb in range(1, min(N, max_unroll) + 1):
        if N % nb:
            continue
        if N >= 2 and N // nb < 2:
            continue
        if 2 * nb * per_img > budget_bytes:
            continue
        best = nb
    return best


def _make_conv_kernel(Nb, C, K, H, W, H_out, W_out, pad):
    Hp, Wp = H + 2 * pad, W + 2 * pad
    KK = K * K

    def conv_kernel(w_ref, x_ref, o_ref, xpad_ref):
        # w_ref   : SMEM (C*K*K,)            weight taps (scalars)
        # x_ref   : VMEM (Nb, H, W)          raw (unpadded) input images for this step
        # o_ref   : VMEM (Nb, C, H_out, W_out) output block
        # xpad_ref: VMEM (Hp, Wp)            padded-image scratch

        # Zero the scratch once per grid step: the border stays zero across the Nb
        # images (interior is rewritten per image).  Unconditional -> megacore safe.
        xpad_ref[...] = jnp.zeros((Hp, Wp), jnp.float32)

        for b in range(Nb):  # static unroll over the images of this block
            # In-kernel zero padding: copy the raw image into the scratch interior.
            xpad_ref[pad:pad + H, pad:pad + W] = x_ref[b].astype(jnp.float32)

            # Hoist the K*K shifted windows out of the channel loop: they do not
            # depend on the output channel, so slice them exactly once per image.
            taps = [xpad_ref[kh:kh + H_out, kw:kw + W_out]
                    for kh in range(K) for kw in range(K)]

            # Per-channel multiply-accumulate on the VPU (f32 throughout).
            chans = []
            for co in range(C):
                acc = taps[0] * w_ref[co * KK]
                for t in range(1, KK):
                    acc = acc + taps[t] * w_ref[co * KK + t]
                chans.append(acc)

            # Single combined store per image instead of C separate stores.
            o_ref[b] = jnp.stack(chans, axis=0).astype(o_ref.dtype)

    return conv_kernel


def conv2d_pallas(x, weight, stride=1, padding=1, images_per_block=None):
    """Conv2d(1 -> C, kernel K, stride 1, padding `padding`, no bias) via Pallas."""
    N, Cin, H, W = x.shape
    C, Cw, K, K2 = weight.shape
    assert Cin == 1 and Cw == 1, "module has a single input channel"
    assert K == K2, "square kernel expected"
    # TODO(synk): stride > 1 not implemented; the module default (stride=1) is assumed.
    assert stride == 1, "only stride=1 (the module default) is implemented"

    H_out = (H + 2 * padding - K) // stride + 1
    W_out = (W + 2 * padding - K) // stride + 1
    Hp, Wp = H + 2 * padding, W + 2 * padding

    Nb = images_per_block or _pick_images_per_block(N, H, W, C, H_out, W_out)
    assert N % Nb == 0
    grid = (N // Nb,)

    # Layout-only glue (no compute, no padding here).
    x_sq = x[:, 0, :, :].astype(jnp.float32)                 # (N, H, W)
    w_flat = weight.astype(jnp.float32).reshape(C * K * K)   # scalar table for SMEM

    kernel = _make_conv_kernel(Nb, C, K, H, W, H_out, W_out, padding)
    out = pl.pallas_call(
        kernel,
        out_shape=jax.ShapeDtypeStruct((N, C, H_out, W_out), jnp.float32),
        grid=grid,
        in_specs=[
            pl.BlockSpec(memory_space=pltpu.MemorySpace.SMEM),          # weight scalars
            pl.BlockSpec((Nb, H, W), lambda n: (n, 0, 0)),              # raw images
        ],
        out_specs=pl.BlockSpec((Nb, C, H_out, W_out), lambda n: (n, 0, 0, 0)),
        scratch_shapes=[pltpu.VMEM((Hp, Wp), jnp.float32)],
        compiler_params=pltpu.CompilerParams(
            dimension_semantics=("parallel",),
            vmem_limit_bytes=32 * 1024 * 1024),
    )(w_flat, x_sq)
    return out


if __name__ == "__main__":
    key = jax.random.PRNGKey(0)
    k_w, k_x = jax.random.split(key)

    # Small shapes consistent with the module: CNN(c=4, k=3, stride=1), 1-channel input.
    N, H, W = 2, 16, 16
    C, K = 4, 3

    # Deterministic synthetic parameters (Conv2d weight shape: (C, 1, K, K)).
    fan_in = 1 * K * K
    weight = jax.random.uniform(k_w, (C, 1, K, K), jnp.float32,
                                minval=-1.0, maxval=1.0) / jnp.sqrt(fan_in)
    x = jax.random.normal(k_x, (N, 1, H, W), jnp.float32)

    out = conv2d_pallas(x, weight, padding=1)
    out = jax.block_until_ready(out)

    # Correctness cross-check against XLA's conv.
    ref = jax.lax.conv_general_dilated(
        x, weight, window_strides=(1, 1), padding=((1, 1), (1, 1)),
        dimension_numbers=("NCHW", "OIHW", "NCHW"))
    assert out.shape == (N, C, H, W)
    assert jnp.allclose(out, ref, atol=1e-5, rtol=1e-5), "mismatch vs reference conv"
    print("KERNEL_OK")
</pallas_src>

<mosaic_0001>
module attributes {stable_mosaic.version = 11 : i64} {
  func.func @conv_kernel(%arg0: i32, %arg1: memref<36xf32, #tpu.memory_space<smem>>, %arg2: memref<1x16x16xf32, #tpu.memory_space<vmem>>, %arg3: memref<1x4x16x16xf32, #tpu.memory_space<vmem>>, %arg4: memref<18x18xf32, #tpu.memory_space<vmem>>) attributes {dimension_semantics = [#tpu.dimension_semantics<parallel>], iteration_bounds = array<i64: 2>, scalar_prefetch = 0 : i64, scratch_operands = 1 : i64, tpu.core_type = #tpu.core_type<tc>, window_params = [{transform_indices = @transform_0, window_bounds = array<i64: 36>}, {transform_indices = @transform_1, window_bounds = array<i64: 1, 16, 16>}, {transform_indices = @transform_2, window_bounds = array<i64: 1, 4, 16, 16>}]} {
    %cst = arith.constant 0.000000e+00 : f32
    %0 = vector.broadcast %cst : f32 to vector<18x18xf32>
    %c0 = arith.constant 0 : index
    %c0_0 = arith.constant 0 : index
    %1 = vector.load %arg4[%c0, %c0_0] : memref<18x18xf32, #tpu.memory_space<vmem>>, vector<18x18xf32>
    tpu.vector_store %arg4[%c0, %c0_0], %0 {strides = array<i32>} : memref<18x18xf32, #tpu.memory_space<vmem>>, vector<18x18xf32>,
    %c0_1 = arith.constant 0 : index
    %c0_2 = arith.constant 0 : index
    %c0_3 = arith.constant 0 : index
    %2 = vector.load %arg2[%c0_1, %c0_2, %c0_3] : memref<1x16x16xf32, #tpu.memory_space<vmem>>, vector<1x16x16xf32>
    %3 = vector.shape_cast %2 : vector<1x16x16xf32> to vector<16x16xf32>
    %c1 = arith.constant 1 : index
    %c1_4 = arith.constant 1 : index
    %4 = vector.load %arg4[%c1, %c1_4] : memref<18x18xf32, #tpu.memory_space<vmem>>, vector<16x16xf32>
    tpu.vector_store %arg4[%c1, %c1_4], %3 {strides = array<i32>} : memref<18x18xf32, #tpu.memory_space<vmem>>, vector<16x16xf32>,
    %c0_5 = arith.constant 0 : index
    %c0_6 = arith.constant 0 : index
    %5 = vector.load %arg4[%c0_5, %c0_6] : memref<18x18xf32, #tpu.memory_space<vmem>>, vector<16x16xf32>
    %c0_7 = arith.constant 0 : index
    %c1_8 = arith.constant 1 : index
    %6 = vector.load %arg4[%c0_7, %c1_8] : memref<18x18xf32, #tpu.memory_space<vmem>>, vector<16x16xf32>
    %c0_9 = arith.constant 0 : index
    %c2 = arith.constant 2 : index
    %7 = vector.load %arg4[%c0_9, %c2] : memref<18x18xf32, #tpu.memory_space<vmem>>, vector<16x16xf32>
    %c1_10 = arith.constant 1 : index
    %c0_11 = arith.constant 0 : index
    %8 = vector.load %arg4[%c1_10, %c0_11] : memref<18x18xf32, #tpu.memory_space<vmem>>, vector<16x16xf32>
    %c1_12 = arith.constant 1 : index
    %c1_13 = arith.constant 1 : index
    %9 = vector.load %arg4[%c1_12, %c1_13] : memref<18x18xf32, #tpu.memory_space<vmem>>, vector<16x16xf32>
    %c1_14 = arith.constant 1 : index
    %c2_15 = arith.constant 2 : index
    %10 = vector.load %arg4[%c1_14, %c2_15] : memref<18x18xf32, #tpu.memory_space<vmem>>, vector<16x16xf32>
    %c2_16 = arith.constant 2 : index
    %c0_17 = arith.constant 0 : index
    %11 = vector.load %arg4[%c2_16, %c0_17] : memref<18x18xf32, #tpu.memory_space<vmem>>, vector<16x16xf32>
    %c2_18 = arith.constant 2 : index
    %c1_19 = arith.constant 1 : index
    %12 = vector.load %arg4[%c2_18, %c1_19] : memref<18x18xf32, #tpu.memory_space<vmem>>, vector<16x16xf32>
    %c2_20 = arith.constant 2 : index
    %c2_21 = arith.constant 2 : index
    %13 = vector.load %arg4[%c2_20, %c2_21] : memref<18x18xf32, #tpu.memory_space<vmem>>, vector<16x16xf32>
    %c0_22 = arith.constant 0 : index
    %14 = memref.load %arg1[%c0_22] : memref<36xf32, #tpu.memory_space<smem>>
    %15 = vector.broadcast %14 : f32 to vector<16x16xf32>
    %16 = arith.mulf %5, %15 : vector<16x16xf32>
    %c1_23 = arith.constant 1 : index
    %17 = memref.load %arg1[%c1_23] : memref<36xf32, #tpu.memory_space<smem>>
    %18 = vector.broadcast %17 : f32 to vector<16x16xf32>
    %19 = arith.mulf %6, %18 : vector<16x16xf32>
    %20 = arith.addf %16, %19 : vector<16x16xf32>
    %c2_24 = arith.constant 2 : index
    %21 = memref.load %arg1[%c2_24] : memref<36xf32, #tpu.memory_space<smem>>
    %22 = vector.broadcast %21 : f32 to vector<16x16xf32>
    %23 = arith.mulf %7, %22 : vector<16x16xf32>
    %24 = arith.addf %20, %23 : vector<16x16xf32>
    %c3 = arith.constant 3 : index
    %25 = memref.load %arg1[%c3] : memref<36xf32, #tpu.memory_space<smem>>
    %26 = vector.broadcast %25 : f32 to vector<16x16xf32>
    %27 = arith.mulf %8, %26 : vector<16x16xf32>
    %28 = arith.addf %24, %27 : vector<16x16xf32>
    %c4 = arith.constant 4 : index
    %29 = memref.load %arg1[%c4] : memref<36xf32, #tpu.memory_space<smem>>
    %30 = vector.broadcast %29 : f32 to vector<16x16xf32>
    %31 = arith.mulf %9, %30 : vector<16x16xf32>
    %32 = arith.addf %28, %31 : vector<16x16xf32>
    %c5 = arith.constant 5 : index
    %33 = memref.load %arg1[%c5] : memref<36xf32, #tpu.memory_space<smem>>
    %34 = vector.broadcast %33 : f32 to vector<16x16xf32>
    %35 = arith.mulf %10, %34 : vector<16x16xf32>
    %36 = arith.addf %32, %35 : vector<16x16xf32>
    %c6 = arith.constant 6 : index
    %37 = memref.load %arg1[%c6] : memref<36xf32, #tpu.memory_space<smem>>
    %38 = vector.broadcast %37 : f32 to vector<16x16xf32>
    %39 = arith.mulf %11, %38 : vector<16x16xf32>
    %40 = arith.addf %36, %39 : vector<16x16xf32>
    %c7 = arith.constant 7 : index
    %41 = memref.load %arg1[%c7] : memref<36xf32, #tpu.memory_space<smem>>
    %42 = vector.broadcast %41 : f32 to vector<16x16xf32>
    %43 = arith.mulf %12, %42 : vector<16x16xf32>
    %44 = arith.addf %40, %43 : vector<16x16xf32>
    %c8 = arith.constant 8 : index
    %45 = memref.load %arg1[%c8] : memref<36xf32, #tpu.memory_space<smem>>
    %46 = vector.broadcast %45 : f32 to vector<16x16xf32>
    %47 = arith.mulf %13, %46 : vector<16x16xf32>
    %48 = arith.addf %44, %47 : vector<16x16xf32>
    %c9 = arith.constant 9 : index
    %49 = memref.load %arg1[%c9] : memref<36xf32, #tpu.memory_space<smem>>
    %50 = vector.broadcast %49 : f32 to vector<16x16xf32>
    %51 = arith.mulf %5, %50 : vector<16x16xf32>
    %c10 = arith.constant 10 : index
    %52 = memref.load %arg1[%c10] : memref<36xf32, #tpu.memory_space<smem>>
    %53 = vector.broadcast %52 : f32 to vector<16x16xf32>
    %54 = arith.mulf %6, %53 : vector<16x16xf32>
    %55 = arith.addf %51, %54 : vector<16x16xf32>
    %c11 = arith.constant 11 : index
    %56 = memref.load %arg1[%c11] : memref<36xf32, #tpu.memory_space<smem>>
    %57 = vector.broadcast %56 : f32 to vector<16x16xf32>
    %58 = arith.mulf %7, %57 : vector<16x16xf32>
    %59 = arith.addf %55, %58 : vector<16x16xf32>
    %c12 = arith.constant 12 : index
    %60 = memref.load %arg1[%c12] : memref<36xf32, #tpu.memory_space<smem>>
    %61 = vector.broadcast %60 : f32 to vector<16x16xf32>
    %62 = arith.mulf %8, %61 : vector<16x16xf32>
    %63 = arith.addf %59, %62 : vector<16x16xf32>
    %c13 = arith.constant 13 : index
    %64 = memref.load %arg1[%c13] : memref<36xf32, #tpu.memory_space<smem>>
    %65 = vector.broadcast %64 : f32 to vector<16x16xf32>
    %66 = arith.mulf %9, %65 : vector<16x16xf32>
    %67 = arith.addf %63, %66 : vector<16x16xf32>
    %c14 = arith.constant 14 : index
    %68 = memref.load %arg1[%c14] : memref<36xf32, #tpu.memory_space<smem>>
    %69 = vector.broadcast %68 : f32 to vector<16x16xf32>
    %70 = arith.mulf %10, %69 : vector<16x16xf32>
    %71 = arith.addf %67, %70 : vector<16x16xf32>
    %c15 = arith.constant 15 : index
    %72 = memref.load %arg1[%c15] : memref<36xf32, #tpu.memory_space<smem>>
    %73 = vector.broadcast %72 : f32 to vector<16x16xf32>
    %74 = arith.mulf %11, %73 : vector<16x16xf32>
    %75 = arith.addf %71, %74 : vector<16x16xf32>
    %c16 = arith.constant 16 : index
    %76 = memref.load %arg1[%c16] : memref<36xf32, #tpu.memory_space<smem>>
    %77 = vector.broadcast %76 : f32 to vector<16x16xf32>
    %78 = arith.mulf %12, %77 : vector<16x16xf32>
    %79 = arith.addf %75, %78 : vector<16x16xf32>
    %c17 = arith.constant 17 : index
    %80 = memref.load %arg1[%c17] : memref<36xf32, #tpu.memory_space<smem>>
    %81 = vector.broadcast %80 : f32 to vector<16x16xf32>
    %82 = arith.mulf %13, %81 : vector<16x16xf32>
    %83 = arith.addf %79, %82 : vector<16x16xf32>
    %c18 = arith.constant 18 : index
    %84 = memref.load %arg1[%c18] : memref<36xf32, #tpu.memory_space<smem>>
    %85 = vector.broadcast %84 : f32 to vector<16x16xf32>
    %86 = arith.mulf %5, %85 : vector<16x16xf32>
    %c19 = arith.constant 19 : index
    %87 = memref.load %arg1[%c19] : memref<36xf32, #tpu.memory_space<smem>>
    %88 = vector.broadcast %87 : f32 to vector<16x16xf32>
    %89 = arith.mulf %6, %88 : vector<16x16xf32>
    %90 = arith.addf %86, %89 : vector<16x16xf32>
    %c20 = arith.constant 20 : index
    %91 = memref.load %arg1[%c20] : memref<36xf32, #tpu.memory_space<smem>>
    %92 = vector.broadcast %91 : f32 to vector<16x16xf32>
    %93 = arith.mulf %7, %92 : vector<16x16xf32>
    %94 = arith.addf %90, %93 : vector<16x16xf32>
    %c21 = arith.constant 21 : index
    %95 = memref.load %arg1[%c21] : memref<36xf32, #tpu.memory_space<smem>>
    %96 = vector.broadcast %95 : f32 to vector<16x16xf32>
    %97 = arith.mulf %8, %96 : vector<16x16xf32>
    %98 = arith.addf %94, %97 : vector<16x16xf32>
    %c22 = arith.constant 22 : index
    %99 = memref.load %arg1[%c22] : memref<36xf32, #tpu.memory_space<smem>>
    %100 = vector.broadcast %99 : f32 to vector<16x16xf32>
    %101 = arith.mulf %9, %100 : vector<16x16xf32>
    %102 = arith.addf %98, %101 : vector<16x16xf32>
    %c23 = arith.constant 23 : index
    %103 = memref.load %arg1[%c23] : memref<36xf32, #tpu.memory_space<smem>>
    %104 = vector.broadcast %103 : f32 to vector<16x16xf32>
    %105 = arith.mulf %10, %104 : vector<16x16xf32>
    %106 = arith.addf %102, %105 : vector<16x16xf32>
    %c24 = arith.constant 24 : index
    %107 = memref.load %arg1[%c24] : memref<36xf32, #tpu.memory_space<smem>>
    %108 = vector.broadcast %107 : f32 to vector<16x16xf32>
    %109 = arith.mulf %11, %108 : vector<16x16xf32>
    %110 = arith.addf %106, %109 : vector<16x16xf32>
    %c25 = arith.constant 25 : index
    %111 = memref.load %arg1[%c25] : memref<36xf32, #tpu.memory_space<smem>>
    %112 = vector.broadcast %111 : f32 to vector<16x16xf32>
    %113 = arith.mulf %12, %112 : vector<16x16xf32>
    %114 = arith.addf %110, %113 : vector<16x16xf32>
    %c26 = arith.constant 26 : index
    %115 = memref.load %arg1[%c26] : memref<36xf32, #tpu.memory_space<smem>>
    %116 = vector.broadcast %115 : f32 to vector<16x16xf32>
    %117 = arith.mulf %13, %116 : vector<16x16xf32>
    %118 = arith.addf %114, %117 : vector<16x16xf32>
    %c27 = arith.constant 27 : index
    %119 = memref.load %arg1[%c27] : memref<36xf32, #tpu.memory_space<smem>>
    %120 = vector.broadcast %119 : f32 to vector<16x16xf32>
    %121 = arith.mulf %5, %120 : vector<16x16xf32>
    %c28 = arith.constant 28 : index
    %122 = memref.load %arg1[%c28] : memref<36xf32, #tpu.memory_space<smem>>
    %123 = vector.broadcast %122 : f32 to vector<16x16xf32>
    %124 = arith.mulf %6, %123 : vector<16x16xf32>
    %125 = arith.addf %121, %124 : vector<16x16xf32>
    %c29 = arith.constant 29 : index
    %126 = memref.load %arg1[%c29] : memref<36xf32, #tpu.memory_space<smem>>
    %127 = vector.broadcast %126 : f32 to vector<16x16xf32>
    %128 = arith.mulf %7, %127 : vector<16x16xf32>
    %129 = arith.addf %125, %128 : vector<16x16xf32>
    %c30 = arith.constant 30 : index
    %130 = memref.load %arg1[%c30] : memref<36xf32, #tpu.memory_space<smem>>
    %131 = vector.broadcast %130 : f32 to vector<16x16xf32>
    %132 = arith.mulf %8, %131 : vector<16x16xf32>
    %133 = arith.addf %129, %132 : vector<16x16xf32>
    %c31 = arith.constant 31 : index
    %134 = memref.load %arg1[%c31] : memref<36xf32, #tpu.memory_space<smem>>
    %135 = vector.broadcast %134 : f32 to vector<16x16xf32>
    %136 = arith.mulf %9, %135 : vector<16x16xf32>
    %137 = arith.addf %133, %136 : vector<16x16xf32>
    %c32 = arith.constant 32 : index
    %138 = memref.load %arg1[%c32] : memref<36xf32, #tpu.memory_space<smem>>
    %139 = vector.broadcast %138 : f32 to vector<16x16xf32>
    %140 = arith.mulf %10, %139 : vector<16x16xf32>
    %141 = arith.addf %137, %140 : vector<16x16xf32>
    %c33 = arith.constant 33 : index
    %142 = memref.load %arg1[%c33] : memref<36xf32, #tpu.memory_space<smem>>
    %143 = vector.broadcast %142 : f32 to vector<16x16xf32>
    %144 = arith.mulf %11, %143 : vector<16x16xf32>
    %145 = arith.addf %141, %144 : vector<16x16xf32>
    %c34 = arith.constant 34 : index
    %146 = memref.load %arg1[%c34] : memref<36xf32, #tpu.memory_space<smem>>
    %147 = vector.broadcast %146 : f32 to vector<16x16xf32>
    %148 = arith.mulf %12, %147 : vector<16x16xf32>
    %149 = arith.addf %145, %148 : vector<16x16xf32>
    %c35 = arith.constant 35 : index
    %150 = memref.load %arg1[%c35] : memref<36xf32, #tpu.memory_space<smem>>
    %151 = vector.broadcast %150 : f32 to vector<16x16xf32>
    %152 = arith.mulf %13, %151 : vector<16x16xf32>
    %153 = arith.addf %149, %152 : vector<16x16xf32>
    %154 = vector.shape_cast %48 : vector<16x16xf32> to vector<1x16x16xf32>
    %155 = vector.shape_cast %83 : vector<16x16xf32> to vector<1x16x16xf32>
    %156 = vector.shape_cast %118 : vector<16x16xf32> to vector<1x16x16xf32>
    %157 = vector.shape_cast %153 : vector<16x16xf32> to vector<1x16x16xf32>
    %158 = tpu.concatenate %154, %155, %156, %157 in 0 : vector<1x16x16xf32>, vector<1x16x16xf32>, vector<1x16x16xf32>, vector<1x16x16xf32> -> vector<4x16x16xf32>
    %c0_25 = arith.constant 0 : index
    %c0_26 = arith.constant 0 : index
    %c0_27 = arith.constant 0 : index
    %c0_28 = arith.constant 0 : index
    %159 = vector.load %arg3[%c0_25, %c0_26, %c0_27, %c0_28] : memref<1x4x16x16xf32, #tpu.memory_space<vmem>>, vector<1x4x16x16xf32>
    %160 = vector.shape_cast %159 : vector<1x4x16x16xf32> to vector<4x16x16xf32>
    %161 = vector.shape_cast %158 : vector<4x16x16xf32> to vector<1x4x16x16xf32>
    tpu.vector_store %arg3[%c0_25, %c0_26, %c0_27, %c0_28], %161 {strides = array<i32>} : memref<1x4x16x16xf32, #tpu.memory_space<vmem>>, vector<1x4x16x16xf32>,
    return
  }
  func.func @transform_0(%arg0: i32) -> i32 {
    %c0_i32 = arith.constant 0 : i32
    %c0_i32_0 = arith.constant 0 : i32
    return %c0_i32 : i32
  }
  func.func @transform_1(%arg0: i32) -> (i32, i32, i32) {
    %c0_i32 = arith.constant 0 : i32
    %c0_i32_0 = arith.constant 0 : i32
    %c0_i32_1 = arith.constant 0 : i32
    return %arg0, %c0_i32, %c0_i32_0 : i32, i32, i32
  }
  func.func @transform_2(%arg0: i32) -> (i32, i32, i32, i32) {
    %c0_i32 = arith.constant 0 : i32
    %c0_i32_0 = arith.constant 0 : i32
    %c0_i32_1 = arith.constant 0 : i32
    %c0_i32_2 = arith.constant 0 : i32
    return %arg0, %c0_i32, %c0_i32_0, %c0_i32_1 : i32, i32, i32, i32
  }
}

</mosaic_0001>

<llo_original>
// kernel: tpu_custom_call.1
$region0: #{tpu_custom_call.1}
  #allocation0 [shape = 'u32[]', space=smem, size = 0x4, offset = 0x4, fixed_abs, tag = 'smem constant byte address 0x4 - core index']
  #allocation1 [shape = 'u32[144,128]{1,0:T(1,128)}', space=vmem, size = 0x12000, scoped, tag = 'internal scratch']
  #allocation2 [shape = 'f32[18,18]{1,0:T(8,128)}', space=vmem, size = 0x3000, scoped, tag = 'scratch operand']
  %s0 = inlined_call_operand.hbm [shape: f32[36], index: 0, kind: input, shape index: {}]
  %s1 = inlined_call_operand.hbm [shape: f32[2,16,16], index: 1, kind: input, shape index: {}]
  %s2 = inlined_call_operand.hbm [shape: f32[2,4,16,16], index: 2, kind: output, shape index: {}]
  %s3 = sld [smem:[#allocation0]]
  $region49: #{tpu_custom_call.1} parent=0
    _
  %s5 = ssub.s32 1, %s3
  %s6 = scalar_select 0, %s5, %s3
  $region1: #{tpu_custom_call.1} parent=0
    #allocation3 [shape = 'u8[512]{0}', space=smem, size = 0x200, scoped, tag = 'input window, operand 0, single buffered']
    #allocation4 [shape = 's32[2]{0}', space=sflag, size = 0x8, scoped, tag = 'scoped memory for tpu_custom_call.1']
    #allocation5 [shape = 's32[2]{0}', space=sflag, size = 0x8, scoped, tag = 'scoped memory for tpu_custom_call.1']
    #allocation6 [shape = 's32[2]{0}', space=sflag, size = 0x8, scoped, tag = 'scoped memory for tpu_custom_call.1']
    #allocation7 [shape = 'u8[16384]{0}', space=vmem, size = 0x4000, scoped, tag = 'input window, operand 1']
    #allocation8 [shape = 'u8[65536]{0}', space=vmem, size = 0x10000, scoped, tag = 'output window, operand 0']
    %7 = vsyncpa [#allocation6], 0
    %8 = vsyncpa [#allocation4], 0
    %s9 = scalar_lea.sflag [#allocation4], 1
    %10 = vsyncpa %s9, 0
    %11 = vsyncpa [#allocation5], 0
    %s12 = scalar_lea.sflag [#allocation5], 1
    %13 = vsyncpa %s12, 0
    loop: start=0, step=1, limit=4
    $region2: #{tpu_custom_call.1} parent=1 // loop_pre_header
      _
    $region3: #{tpu_custom_call.1} parent=1 // loop_header
      %s15 = sphi 0, %s19
      %p16 = scmp.ge.s32.totalorder %s15, 4
      %s23 = sphi 0, %s23
      %s25 = sphi 0, %s23
      %s26 = sphi 0, %s25
      %s40 = sphi 0, %s26
      %s46 = sphi 0, %s48
      %s49 = sphi 0, %s46
      %s50 = sphi 0, %s49
      %s66 = sphi 0, %s50
      %s72 = sphi 0, %s74
      %s75 = sphi 0, %s72
      %s76 = sphi 0, %s75
      %s92 = sphi 0, %s76
    $region4: #{tpu_custom_call.1} parent=1 // loop_header_branch
      %18 = sbr.rel (%p16) target = $region8
    $region5: #{tpu_custom_call.1} parent=1 // loop_body
      %s20 = ssub.s32 %s15, 1
      %s21 = ssub.s32 %s15, 2
      %s22 = sadd.s32 %s15, 1
      %s24 = sadd.s32 %s23, 1
      %p27 = scmp.eq.s32.totalorder %s15, 1
      %p28 = scmp.ne.s32.totalorder %s23, %s25
      %p29 = scmp.eq.s32.totalorder %s15, 0
      %p30 = por %p28, %p29
      %p31 = scmp.ne.s32.totalorder %s23, %s25
      %p32 = scmp.eq.s32.totalorder %s20, 1
      %p33 = por %p31, %p32
      %p34 = scmp.ne.s32.totalorder %s25, %s26
      %p35 = scmp.eq.s32.totalorder %s20, 0
      %p36 = por %p34, %p35
      %p37 = scmp.ne.s32.totalorder %s25, %s26
      %p38 = scmp.eq.s32.totalorder %s21, 1
      %p39 = por %p37, %p38
      %p41 = scmp.ne.s32.totalorder %s26, %s40
      %p42 = scmp.eq.s32.totalorder %s21, 0
      %p43 = por %p41, %p42
      %s44 = ssub.s32 %s15, %s22
      %p45 = scmp.eq.s32.totalorder %s44, 0
      %s47 = sadd.s32 %s46, 1
      %s48 = scalar_select %p45, %s46, %s47
      %p51 = pneg %p45
      %p52 = scmp.eq.s32.totalorder %s15, 1
      %p53 = por %p51, %p52
      %p54 = scmp.ne.s32.totalorder %s46, %s49
      %p55 = scmp.eq.s32.totalorder %s15, 0
      %p56 = por %p54, %p55
      %p57 = scmp.ne.s32.totalorder %s46, %s49
      %p58 = scmp.eq.s32.totalorder %s20, 1
      %p59 = por %p57, %p58
      %p60 = scmp.ne.s32.totalorder %s49, %s50
      %p61 = scmp.eq.s32.totalorder %s20, 0
      %p62 = por %p60, %p61
      %p63 = scmp.ne.s32.totalorder %s49, %s50
      %p64 = scmp.eq.s32.totalorder %s21, 1
      %p65 = por %p63, %p64
      %p67 = scmp.ne.s32.totalorder %s50, %s66
      %p68 = scmp.eq.s32.totalorder %s21, 0
      %p69 = por %p67, %p68
      %s70 = ssub.s32 %s15, %s22
      %p71 = scmp.eq.s32.totalorder %s70, 0
      %s73 = sadd.s32 %s72, 1
      %s74 = scalar_select %p71, %s72, %s73
      %p77 = pneg %p71
      %p78 = scmp.eq.s32.totalorder %s15, 1
      %p79 = por %p77, %p78
      %p80 = scmp.ne.s32.totalorder %s72, %s75
      %p81 = scmp.eq.s32.totalorder %s15, 0
      %p82 = por %p80, %p81
      %p83 = scmp.ne.s32.totalorder %s72, %s75
      %p84 = scmp.eq.s32.totalorder %s20, 1
      %p85 = por %p83, %p84
      %p86 = scmp.ne.s32.totalorder %s75, %s76
      %p87 = scmp.eq.s32.totalorder %s20, 0
      %p88 = por %p86, %p87
      %p89 = scmp.ne.s32.totalorder %s75, %s76
      %p90 = scmp.eq.s32.totalorder %s21, 1
      %p91 = por %p89, %p90
      %p93 = scmp.ne.s32.totalorder %s76, %s92
      %p94 = scmp.eq.s32.totalorder %s21, 0
      %p95 = por %p93, %p94
      %p96 = scmp.le.s32.totalorder 1, %s15
      %p97 = scmp.lt.s32.totalorder %s15, 3
      %p98 = pnand %p96, %p97
      %p99 = pneg %p98
      // Predicated region
      $region9: #{tpu_custom_call.1} parent=5 // pred_check
        _
      $region10: #{tpu_custom_call.1} parent=5 // pred_check_branch
        %101 = sbr.rel (%p98) target = $region12
      $region11: #{tpu_custom_call.1} parent=5 // pred_region
        %s102 = ssub.s32 %s15, 1
        // Predicated region
        $region13: #{tpu_custom_call.1} parent=11 // pred_check
          %p103 = pneg %p36
        $region14: #{tpu_custom_call.1} parent=11 // pred_check_branch
          %105 = sbr.rel (%p103) target = $region16
        $region15: #{tpu_custom_call.1} parent=11 // pred_region
          %s107 = ssub.s32 16, 16
          %108 = vsyncadd [#allocation6], %s107
          %111 = dma.hbm_to_smem %s0, 16, [#allocation3], [#allocation6]
        $region16: #{tpu_custom_call.1} parent=11 // pred_fallthru
          _
      $region12: #{tpu_custom_call.1} parent=5 // pred_fallthru
        _
      %p112 = scmp.lt.s32.totalorder %s15, 2
      // Predicated region
      $region17: #{tpu_custom_call.1} parent=5 // pred_check
        %p113 = pneg %p112
      $region18: #{tpu_custom_call.1} parent=5 // pred_check_branch
        %115 = sbr.rel (%p113) target = $region20
      $region19: #{tpu_custom_call.1} parent=5 // pred_region
        // Predicated region
        $region21: #{tpu_custom_call.1} parent=19 // pred_check
          %p116 = pneg %p56
        $region22: #{tpu_custom_call.1} parent=19 // pred_check_branch
          %118 = sbr.rel (%p116) target = $region24
        $region23: #{tpu_custom_call.1} parent=19 // pred_region
          %s119 = sand.u32 %s46, 1
          %s120 = scalar_lea.sflag [#allocation4], %s119
          %s121 = sand.u32 %s46, 1
          %s122 = smul.addr %s121, 16
          %s123 = scalar_lea.vmem [#allocation7], %s122
          %s125 = ssub.s32 256, 256
          %126 = vsyncadd %s120, %s125
          %s127 = smul.addr %s15, 2
          %s128 = smul.addr %s127, 128
          %s129 = scalar_lea.hbm %s1, %s128
          %s130 = sshll.u32 %s123, 4
          %s131 = int_to_ptr.vmem [resolvable:$true] %s130
          %136 = dma.hbm_to_vmem [thread:$0]  %s129, 256, %s131, %s120, 128, 128, 8
        $region24: #{tpu_custom_call.1} parent=19 // pred_fallthru
          _
      $region20: #{tpu_custom_call.1} parent=5 // pred_fallthru
        _
      %p137 = scmp.le.s32.totalorder 1, %s15
      %p138 = scmp.lt.s32.totalorder %s15, 3
      %p139 = pnand %p137, %p138
      %p140 = pneg %p139
      // Predicated region
      $region25: #{tpu_custom_call.1} parent=5 // pred_check
        _
      $region26: #{tpu_custom_call.1} parent=5 // pred_check_branch
        %142 = sbr.rel (%p139) target = $region28
      $region27: #{tpu_custom_call.1} parent=5 // pred_region
        %s143 = ssub.s32 %s15, 1
        // Predicated region
        $region29: #{tpu_custom_call.1} parent=27 // pred_check
          %p144 = pneg %p36
        $region30: #{tpu_custom_call.1} parent=27 // pred_check_branch
          %146 = sbr.rel (%p144) target = $region32
        $region31: #{tpu_custom_call.1} parent=27 // pred_region
          %147 = dma.done [#allocation6], 16
        $region32: #{tpu_custom_call.1} parent=27 // pred_fallthru
          _
        %s148 = sand.u32 %s49, 1
        %s149 = scalar_lea.sflag [#allocation4], %s148
        %s150 = sand.u32 %s49, 1
        %s151 = smul.addr %s150, 16
        %s152 = scalar_lea.vmem [#allocation7], %s151
        // Predicated region
        $region33: #{tpu_custom_call.1} parent=27 // pred_check
          %p153 = pneg %p62
        $region34: #{tpu_custom_call.1} parent=27 // pred_check_branch
          %155 = sbr.rel (%p153) target = $region36
        $region35: #{tpu_custom_call.1} parent=27 // pred_region
          %156 = dma.done %s149, 256
        $region36: #{tpu_custom_call.1} parent=27 // pred_fallthru
          _
        %157 = sfence
        %p158 = pneg %p36
        %p159 = pneg %p33
        %s160 = sand.u32 %s49, 1
        %s161 = scalar_lea.sflag [#allocation4], %s160
        %s162 = sand.u32 %s49, 1
        %s163 = smul.addr %s162, 16
        %s164 = scalar_lea.vmem [#allocation7], %s163
        %p165 = pneg %p62
        %p166 = pneg %p59
        %p167 = pneg %p88
        %p168 = pneg %p85
        %s169 = sand.u32 %s75, 1
        %s170 = scalar_lea.sflag [#allocation5], %s169
        %s171 = sand.u32 %s75, 1
        %s172 = smul.addr %s171, 64
        %s173 = scalar_lea.vmem [#allocation8], %s172
        %vm174 = vcmask 146432
        %175 = vst.msk [vmem:[#allocation2] sm:$0xff] %vm174, 0.0
        %176 = vst.msk [vmem:[#allocation2 + $0x8] sm:$0xff] %vm174, 0.0
        %vm177 = vcmask 140288
        %178 = vst.msk [vmem:[#allocation2 + $0x10] sm:$0x3] %vm177, 0.0
        %v179 = vld [vmem:[%s152] sm:$0xff]
        %v180 = vld [vmem:[%s152 + $0x8] sm:$0xff]
        %183 = vrot.lane.b32.xlu0 %v179, 1
        %v184 = vpop.permute.xlu0 %183
        %185 = vrot.lane.b32.xlu0 %v180, 1
        %v186 = vpop.permute.xlu0 %185
        %vm189 = vcmask 138248
        %190 = vst.msk [vmem:[#allocation2 + $0x1] sm:$0xff] %vm189, %v184
        %191 = vst.msk [vmem:[#allocation2 + $0x9] sm:$0xff] %vm189, %v186
        %v192 = vld [vmem:[#allocation2] sm:$0xff]
        %v193 = vld [vmem:[#allocation2 + $0x8] sm:$0xff]
        %v194 = vld [vmem:[#allocation2 + $0x1] sm:$0xff]
        %v195 = vld [vmem:[#allocation2 + $0x9] sm:$0xff]
        %v196 = vld [vmem:[#allocation2 + $0x2] sm:$0xff]
        %v197 = vld [vmem:[#allocation2 + $0xa] sm:$0xff]
        %s198 = sld [smem:[#allocation3]]
        %v199 = vstv %s198
        %v200 = vmul.f32 %v192, %v199
        %v201 = vmul.f32 %v193, %v199
        %s202 = sld [smem:[#allocation3 + $0x1]]
        %v203 = vstv %s202
        %v204 = vmul.f32 %v192, %v203
        %v205 = vmul.f32 %v193, %v203
        %208 = vrot.lane.b32.xlu0 %v204, 127
        %v209 = vpop.permute.xlu0 %208
        %210 = vrot.lane.b32.xlu0 %v205, 127
        %v211 = vpop.permute.xlu0 %210
        %v214 = vadd.f32 %v200, %v209
        %v215 = vadd.f32 %v201, %v211
        %s216 = sld [smem:[#allocation3 + $0x2]]
        %v217 = vstv %s216
        %v218 = vmul.f32 %v192, %v217
        %v219 = vmul.f32 %v193, %v217
        %222 = vrot.lane.b32.xlu0 %v218, 126
        %v223 = vpop.permute.xlu0 %222
        %224 = vrot.lane.b32.xlu0 %v219, 126
        %v225 = vpop.permute.xlu0 %224
        %v228 = vadd.f32 %v214, %v223
        %v229 = vadd.f32 %v215, %v225
        %s230 = sld [smem:[#allocation3 + $0x3]]
        %v231 = vstv %s230
        %v232 = vmul.f32 %v194, %v231
        %v233 = vmul.f32 %v195, %v231
        %v234 = vadd.f32 %v228, %v232
        %v235 = vadd.f32 %v229, %v233
        %s236 = sld [smem:[#allocation3 + $0x4]]
        %v237 = vstv %s236
        %v238 = vmul.f32 %v194, %v237
        %v239 = vmul.f32 %v195, %v237
        %242 = vrot.lane.b32.xlu0 %v238, 127
        %v243 = vpop.permute.xlu0 %242
        %244 = vrot.lane.b32.xlu0 %v239, 127
        %v245 = vpop.permute.xlu0 %244
        %v248 = vadd.f32 %v234, %v243
        %v249 = vadd.f32 %v235, %v245
        %s250 = sld [smem:[#allocation3 + $0x5]]
        %v251 = vstv %s250
        %v252 = vmul.f32 %v194, %v251
        %v253 = vmul.f32 %v195, %v251
        %256 = vrot.lane.b32.xlu0 %v252, 126
        %v257 = vpop.permute.xlu0 %256
        %258 = vrot.lane.b32.xlu0 %v253, 126
        %v259 = vpop.permute.xlu0 %258
        %v262 = vadd.f32 %v248, %v257
        %v263 = vadd.f32 %v249, %v259
        %s264 = sld [smem:[#allocation3 + $0x6]]
        %v265 = vstv %s264
        %v266 = vmul.f32 %v196, %v265
        %v267 = vmul.f32 %v197, %v265
        %v268 = vadd.f32 %v262, %v266
        %v269 = vadd.f32 %v263, %v267
        %s270 = sld [smem:[#allocation3 + $0x7]]
        %v271 = vstv %s270
        %v272 = vmul.f32 %v196, %v271
        %v273 = vmul.f32 %v197, %v271
        %276 = vrot.lane.b32.xlu0 %v272, 127
        %v277 = vpop.permute.xlu0 %276
        %278 = vrot.lane.b32.xlu0 %v273, 127
        %v279 = vpop.permute.xlu0 %278
        %v282 = vadd.f32 %v268, %v277
        %v283 = vadd.f32 %v269, %v279
        %s284 = sld [smem:[#allocation3 + $0x8]]
        %v285 = vstv %s284
        %v286 = vmul.f32 %v196, %v285
        %v287 = vmul.f32 %v197, %v285
        %290 = vrot.lane.b32.xlu0 %v286, 126
        %v291 = vpop.permute.xlu0 %290
        %292 = vrot.lane.b32.xlu0 %v287, 126
        %v293 = vpop.permute.xlu0 %292
        %v296 = vadd.f32 %v282, %v291
        %v297 = vadd.f32 %v283, %v293
        %s298 = sld [smem:[#allocation3 + $0x9]]
        %v299 = vstv %s298
        %v300 = vmul.f32 %v192, %v299
        %v301 = vmul.f32 %v193, %v299
        %s302 = sld [smem:[#allocation3 + $0xa]]
        %v303 = vstv %s302
        %v304 = vmul.f32 %v192, %v303
        %v305 = vmul.f32 %v193, %v303
        %308 = vrot.lane.b32.xlu0 %v304, 127
        %v309 = vpop.permute.xlu0 %308
        %310 = vrot.lane.b32.xlu0 %v305, 127
        %v311 = vpop.permute.xlu0 %310
        %v314 = vadd.f32 %v300, %v309
        %v315 = vadd.f32 %v301, %v311
        %s316 = sld [smem:[#allocation3 + $0xb]]
        %v317 = vstv %s316
        %v318 = vmul.f32 %v192, %v317
        %v319 = vmul.f32 %v193, %v317
        %322 = vrot.lane.b32.xlu0 %v318, 126
        %v323 = vpop.permute.xlu0 %322
        %324 = vrot.lane.b32.xlu0 %v319, 126
        %v325 = vpop.permute.xlu0 %324
        %v328 = vadd.f32 %v314, %v323
        %v329 = vadd.f32 %v315, %v325
        %s330 = sld [smem:[#allocation3 + $0xc]]
        %v331 = vstv %s330
        %v332 = vmul.f32 %v194, %v331
        %v333 = vmul.f32 %v195, %v331
        %v334 = vadd.f32 %v328, %v332
        %v335 = vadd.f32 %v329, %v333
        %s336 = sld [smem:[#allocation3 + $0xd]]
        %v337 = vstv %s336
        %v338 = vmul.f32 %v194, %v337
        %v339 = vmul.f32 %v195, %v337
        %342 = vrot.lane.b32.xlu0 %v338, 127
        %v343 = vpop.permute.xlu0 %342
        %344 = vrot.lane.b32.xlu0 %v339, 127
        %v345 = vpop.permute.xlu0 %344
        %v348 = vadd.f32 %v334, %v343
        %v349 = vadd.f32 %v335, %v345
        %s350 = sld [smem:[#allocation3 + $0xe]]
        %v351 = vstv %s350
        %v352 = vmul.f32 %v194, %v351
        %v353 = vmul.f32 %v195, %v351
        %356 = vrot.lane.b32.xlu0 %v352, 126
        %v357 = vpop.permute.xlu0 %356
        %358 = vrot.lane.b32.xlu0 %v353, 126
        %v359 = vpop.permute.xlu0 %358
        %v362 = vadd.f32 %v348, %v357
        %v363 = vadd.f32 %v349, %v359
        %s364 = sld [smem:[#allocation3 + $0xf]]
        %v365 = vstv %s364
        %v366 = vmul.f32 %v196, %v365
        %v367 = vmul.f32 %v197, %v365
        %v368 = vadd.f32 %v362, %v366
        %v369 = vadd.f32 %v363, %v367
        %s370 = sld [smem:[#allocation3 + $0x10]]
        %v371 = vstv %s370
        %v372 = vmul.f32 %v196, %v371
        %v373 = vmul.f32 %v197, %v371
        %376 = vrot.lane.b32.xlu0 %v372, 127
        %v377 = vpop.permute.xlu0 %376
        %378 = vrot.lane.b32.xlu0 %v373, 127
        %v379 = vpop.permute.xlu0 %378
        %v382 = vadd.f32 %v368, %v377
        %v383 = vadd.f32 %v369, %v379
        %s384 = sld [smem:[#allocation3 + $0x11]]
        %v385 = vstv %s384
        %v386 = vmul.f32 %v196, %v385
        %v387 = vmul.f32 %v197, %v385
        %390 = vrot.lane.b32.xlu0 %v386, 126
        %v391 = vpop.permute.xlu0 %390
        %392 = vrot.lane.b32.xlu0 %v387, 126
        %v393 = vpop.permute.xlu0 %392
        %v396 = vadd.f32 %v382, %v391
        %v397 = vadd.f32 %v383, %v393
        %s398 = sld [smem:[#allocation3 + $0x12]]
        %v399 = vstv %s398
        %v400 = vmul.f32 %v192, %v399
        %v401 = vmul.f32 %v193, %v399
        %s402 = sld [smem:[#allocation3 + $0x13]]
        %v403 = vstv %s402
        %v404 = vmul.f32 %v192, %v403
        %v405 = vmul.f32 %v193, %v403
        %408 = vrot.lane.b32.xlu0 %v404, 127
        %v409 = vpop.permute.xlu0 %408
        %410 = vrot.lane.b32.xlu0 %v405, 127
        %v411 = vpop.permute.xlu0 %410
        %v414 = vadd.f32 %v400, %v409
        %v415 = vadd.f32 %v401, %v411
        %s416 = sld [smem:[#allocation3 + $0x14]]
        %v417 = vstv %s416
        %v418 = vmul.f32 %v192, %v417
        %v419 = vmul.f32 %v193, %v417
        %422 = vrot.lane.b32.xlu0 %v418, 126
        %v423 = vpop.permute.xlu0 %422
        %424 = vrot.lane.b32.xlu0 %v419, 126
        %v425 = vpop.permute.xlu0 %424
        %v428 = vadd.f32 %v414, %v423
        %v429 = vadd.f32 %v415, %v425
        %s430 = sld [smem:[#allocation3 + $0x15]]
        %v431 = vstv %s430
        %v432 = vmul.f32 %v194, %v431
        %v433 = vmul.f32 %v195, %v431
        %v434 = vadd.f32 %v428, %v432
        %v435 = vadd.f32 %v429, %v433
        %s436 = sld [smem:[#allocation3 + $0x16]]
        %v437 = vstv %s436
        %v438 = vmul.f32 %v194, %v437
        %v439 = vmul.f32 %v195, %v437
        %442 = vrot.lane.b32.xlu0 %v438, 127
        %v443 = vpop.permute.xlu0 %442
        %444 = vrot.lane.b32.xlu0 %v439, 127
        %v445 = vpop.permute.xlu0 %444
        %v448 = vadd.f32 %v434, %v443
        %v449 = vadd.f32 %v435, %v445
        %s450 = sld [smem:[#allocation3 + $0x17]]
        %v451 = vstv %s450
        %v452 = vmul.f32 %v194, %v451
        %v453 = vmul.f32 %v195, %v451
        %456 = vrot.lane.b32.xlu0 %v452, 126
        %v457 = vpop.permute.xlu0 %456
        %458 = vrot.lane.b32.xlu0 %v453, 126
        %v459 = vpop.permute.xlu0 %458
        %v462 = vadd.f32 %v448, %v457
        %v463 = vadd.f32 %v449, %v459
        %s464 = sld [smem:[#allocation3 + $0x18]]
        %v465 = vstv %s464
        %v466 = vmul.f32 %v196, %v465
        %v467 = vmul.f32 %v197, %v465
        %v468 = vadd.f32 %v462, %v466
        %v469 = vadd.f32 %v463, %v467
        %s470 = sld [smem:[#allocation3 + $0x19]]
        %v471 = vstv %s470
        %v472 = vmul.f32 %v196, %v471
        %v473 = vmul.f32 %v197, %v471
        %476 = vrot.lane.b32.xlu0 %v472, 127
        %v477 = vpop.permute.xlu0 %476
        %478 = vrot.lane.b32.xlu0 %v473, 127
        %v479 = vpop.permute.xlu0 %478
        %v482 = vadd.f32 %v468, %v477
        %v483 = vadd.f32 %v469, %v479
        %s484 = sld [smem:[#allocation3 + $0x1a]]
        %v485 = vstv %s484
        %v486 = vmul.f32 %v196, %v485
        %v487 = vmul.f32 %v197, %v485
        %490 = vrot.lane.b32.xlu0 %v486, 126
        %v491 = vpop.permute.xlu0 %490
        %492 = vrot.lane.b32.xlu0 %v487, 126
        %v493 = vpop.permute.xlu0 %492
        %v496 = vadd.f32 %v482, %v491
        %v497 = vadd.f32 %v483, %v493
        %s498 = sld [smem:[#allocation3 + $0x1b]]
        %v499 = vstv %s498
        %v500 = vmul.f32 %v192, %v499
        %v501 = vmul.f32 %v193, %v499
        %s502 = sld [smem:[#allocation3 + $0x1c]]
        %v503 = vstv %s502
        %v504 = vmul.f32 %v192, %v503
        %v505 = vmul.f32 %v193, %v503
        %508 = vrot.lane.b32.xlu0 %v504, 127
        %v509 = vpop.permute.xlu0 %508
        %510 = vrot.lane.b32.xlu0 %v505, 127
        %v511 = vpop.permute.xlu0 %510
        %v514 = vadd.f32 %v500, %v509
        %v515 = vadd.f32 %v501, %v511
        %s516 = sld [smem:[#allocation3 + $0x1d]]
        %v517 = vstv %s516
        %v518 = vmul.f32 %v192, %v517
        %v519 = vmul.f32 %v193, %v517
        %522 = vrot.lane.b32.xlu0 %v518, 126
        %v523 = vpop.permute.xlu0 %522
        %524 = vrot.lane.b32.xlu0 %v519, 126
        %v525 = vpop.permute.xlu0 %524
        %v528 = vadd.f32 %v514, %v523
        %v529 = vadd.f32 %v515, %v525
        %s530 = sld [smem:[#allocation3 + $0x1e]]
        %v531 = vstv %s530
        %v532 = vmul.f32 %v194, %v531
        %v533 = vmul.f32 %v195, %v531
        %v534 = vadd.f32 %v528, %v532
        %v535 = vadd.f32 %v529, %v533
        %s536 = sld [smem:[#allocation3 + $0x1f]]
        %v537 = vstv %s536
        %v538 = vmul.f32 %v194, %v537
        %v539 = vmul.f32 %v195, %v537
        %542 = vrot.lane.b32.xlu0 %v538, 127
        %v543 = vpop.permute.xlu0 %542
        %544 = vrot.lane.b32.xlu0 %v539, 127
        %v545 = vpop.permute.xlu0 %544
        %v548 = vadd.f32 %v534, %v543
        %v549 = vadd.f32 %v535, %v545
        %s550 = sld [smem:[#allocation3 + $0x20]]
        %v551 = vstv %s550
        %v552 = vmul.f32 %v194, %v551
        %v553 = vmul.f32 %v195, %v551
        %556 = vrot.lane.b32.xlu0 %v552, 126
        %v557 = vpop.permute.xlu0 %556
        %558 = vrot.lane.b32.xlu0 %v553, 126
        %v559 = vpop.permute.xlu0 %558
        %v562 = vadd.f32 %v548, %v557
        %v563 = vadd.f32 %v549, %v559
        %s564 = sld [smem:[#allocation3 + $0x21]]
        %v565 = vstv %s564
        %v566 = vmul.f32 %v196, %v565
        %v567 = vmul.f32 %v197, %v565
        %v568 = vadd.f32 %v562, %v566
        %v569 = vadd.f32 %v563, %v567
        %s570 = sld [smem:[#allocation3 + $0x22]]
        %v571 = vstv %s570
        %v572 = vmul.f32 %v196, %v571
        %v573 = vmul.f32 %v197, %v571
        %576 = vrot.lane.b32.xlu0 %v572, 127
        %v577 = vpop.permute.xlu0 %576
        %578 = vrot.lane.b32.xlu0 %v573, 127
        %v579 = vpop.permute.xlu0 %578
        %v582 = vadd.f32 %v568, %v577
        %v583 = vadd.f32 %v569, %v579
        %s584 = sld [smem:[#allocation3 + $0x23]]
        %v585 = vstv %s584
        %v586 = vmul.f32 %v196, %v585
        %v587 = vmul.f32 %v197, %v585
        %590 = vrot.lane.b32.xlu0 %v586, 126
        %v591 = vpop.permute.xlu0 %590
        %592 = vrot.lane.b32.xlu0 %v587, 126
        %v593 = vpop.permute.xlu0 %592
        %v596 = vadd.f32 %v582, %v591
        %v597 = vadd.f32 %v583, %v593
        %vm598 = vcmask 130048
        %599 = vst.msk [vmem:[%s173] sm:$0xff] %vm598, %v296
        %600 = vst.msk [vmem:[%s173 + $0x8] sm:$0xff] %vm598, %v297
        %601 = vst.msk [vmem:[%s173 + $0x10] sm:$0xff] %vm598, %v396
        %602 = vst.msk [vmem:[%s173 + $0x18] sm:$0xff] %vm598, %v397
        %603 = vst.msk [vmem:[%s173 + $0x20] sm:$0xff] %vm598, %v496
        %604 = vst.msk [vmem:[%s173 + $0x28] sm:$0xff] %vm598, %v497
        %605 = vst.msk [vmem:[%s173 + $0x30] sm:$0xff] %vm598, %v596
        %606 = vst.msk [vmem:[%s173 + $0x38] sm:$0xff] %vm598, %v597
        %s607 = sand.u32 %s75, 1
        %s608 = scalar_lea.sflag [#allocation5], %s607
        %s609 = sand.u32 %s75, 1
        %s610 = smul.addr %s609, 64
        %s611 = scalar_lea.vmem [#allocation8], %s610
        // Predicated region
        $region37: #{tpu_custom_call.1} parent=27 // pred_check
          %p612 = pneg %p85
        $region38: #{tpu_custom_call.1} parent=27 // pred_check_branch
          %614 = sbr.rel (%p612) target = $region40
        $region39: #{tpu_custom_call.1} parent=27 // pred_region
          %s616 = ssub.s32 1024, 1024
          %617 = vsyncadd %s608, %s616
          %s618 = smul.addr %s20, 8
          %s619 = smul.addr %s618, 128
          %s620 = scalar_lea.hbm %s2, %s619
          %s621 = sshll.u32 %s611, 4
          %s622 = int_to_ptr.vmem [resolvable:$true] %s621
          %627 = dma.vmem_to_hbm [thread:$0]  %s622, 1024, %s620, %s608, 128, 128, 8
        $region40: #{tpu_custom_call.1} parent=27 // pred_fallthru
          _
      $region28: #{tpu_custom_call.1} parent=5 // pred_fallthru
        _
      %p628 = scmp.le.s32.totalorder 2, %s15
      // Predicated region
      $region41: #{tpu_custom_call.1} parent=5 // pred_check
        %p629 = pneg %p628
      $region42: #{tpu_custom_call.1} parent=5 // pred_check_branch
        %631 = sbr.rel (%p629) target = $region44
      $region43: #{tpu_custom_call.1} parent=5 // pred_region
        %s632 = ssub.s32 %s15, 2
        // Predicated region
        $region45: #{tpu_custom_call.1} parent=43 // pred_check
          %p633 = pneg %p91
        $region46: #{tpu_custom_call.1} parent=43 // pred_check_branch
          %635 = sbr.rel (%p633) target = $region48
        $region47: #{tpu_custom_call.1} parent=43 // pred_region
          %s636 = sand.u32 %s76, 1
          %s637 = scalar_lea.sflag [#allocation5], %s636
          %s638 = sand.u32 %s76, 1
          %s639 = smul.addr %s638, 64
          %s640 = scalar_lea.vmem [#allocation8], %s639
          %641 = dma.done %s637, 1024
        $region48: #{tpu_custom_call.1} parent=43 // pred_fallthru
          _
      $region44: #{tpu_custom_call.1} parent=5 // pred_fallthru
        _
    $region6: #{tpu_custom_call.1} parent=1 // loop_footer
      %s19 = sadd.s32 1, %s15
    $region7: #{tpu_custom_call.1} parent=1 // loop_footer_branch
      %14 = sbr.rel target = $region3
    $region8: #{tpu_custom_call.1} parent=1 // loop_exit
      _
    %642 = vsyncpa [#allocation4], 1
    %s643 = scalar_lea.sflag [#allocation4], 1
    %644 = vsyncpa %s643, 1
    %645 = vsyncpa [#allocation5], 1
    %s646 = scalar_lea.sflag [#allocation5], 1
    %647 = vsyncpa %s646, 1
    %648 = vsyncpa [#allocation6], 1
    %s649 = scalar_lea.sflag [#allocation6], 1
    %650 = vsyncpa %s649, 1

</llo_original>
